<compile_context>
chip_gen: v5e
topology: v5e:2x2
jax: 0.10.0
libtpu: 0.0.40
codegen_flags: <defaults>
</compile_context>

<pallas_src>
import functools

import jax
import jax.numpy as jnp
from jax.experimental import pallas as pl
from jax.experimental.pallas import tpu as pltpu


def _focal_ce_kernel(logits_ref, target_ref, weight_ref, num_ref, den_ref,
                     acc_ref, *, ignore_label, hw, chunk, n_chunks):
    j = pl.program_id(1)
    tile = logits_ref.shape[2]

    @pl.when(j == 0)
    def _init():
        acc_ref[...] = jnp.zeros_like(acc_ref)

    w = weight_ref[...].astype(jnp.float32)                      # (C, 1)
    c = w.shape[0]
    cls = jax.lax.broadcasted_iota(jnp.int32, (c, 1), 0)         # (C, 1)
    lane = jax.lax.broadcasted_iota(jnp.int32, (1, chunk), 1)    # (1, CHUNK)
    tile_base = j * tile

    def body(i, carry):
        start = pl.multiple_of(i * chunk, chunk)
        sl = pl.ds(start, chunk)
        x = logits_ref[0, :, sl].astype(jnp.float32)             # (C, CHUNK)
        t = target_ref[0, :, sl].astype(jnp.int32)               # (1, CHUNK)

        # numerically stable log-softmax over the class (sublane) axis;
        # logpt = x_t - m - lse (never materialize a full log-prob tile).
        m = jnp.max(x, axis=0, keepdims=True)                    # (1, CHUNK)
        lse = jnp.log(jnp.sum(jnp.exp(x - m), axis=0, keepdims=True))

        hit = (cls == t)                                         # (C, CHUNK) bool
        x_t = jnp.sum(jnp.where(hit, x, 0.0), axis=0, keepdims=True)   # logit@t
        wt = jnp.sum(jnp.where(hit, w, 0.0), axis=0, keepdims=True)    # weight@t

        # valid = not ignore_label AND inside the true pixel range (the ragged
        # tail of the last block holds garbage lanes -> use where, NOT multiply,
        # so NaN/inf in masked lanes can never leak into the accumulators).
        pos = tile_base + i * chunk + lane
        valid = (t != ignore_label) & (pos < hw)                 # (1, CHUNK)

        contrib = jnp.concatenate([(m + lse - x_t) * wt,         # w_t * nll_t
                                   wt], axis=0)                  # (2, CHUNK)
        acc_ref[...] += jnp.where(valid, contrib, 0.0)
        return carry

    jax.lax.fori_loop(0, n_chunks, body, 0, unroll=True)

    @pl.when(j == pl.num_programs(1) - 1)
    def _finalize():
        sums = jnp.sum(acc_ref[...], axis=1, keepdims=True)      # (2, 1)
        num_ref[...] = sums[0:1].reshape(1, 1, 1)
        den_ref[...] = sums[1:2].reshape(1, 1, 1)


def focal_loss_2d(score, target, weight, *, gamma=2, ignore_label=-1,
                  size_average=True, tile_pixels=16384, chunk_pixels=2048):
    """score: (N, C, H, W) logits (any float dtype); target: (N, h, w) int
    labels; weight: (C,) per-class weights.  Returns a scalar float32 loss."""
    n, c, ph, pw = score.shape
    h, w = target.shape[1], target.shape[2]
    if (ph, pw) != (h, w):
        # TODO(synk): fuse the 4-tap bilinear upsample into the kernel (gather
        # source rows via index_map / manual DMA) to drop this extra HBM pass;
        # also PyTorch F.upsample(mode='bilinear') align_corners semantics are
        # not bit-exact vs jax.image.resize.  At minimum the resized logits are
        # cast back to the input dtype so the kernel keeps streaming bf16.
        score = jax.image.resize(score.astype(jnp.float32), (n, c, h, w),
                                 method="bilinear").astype(score.dtype)

    hw = h * w
    # Class-major (N, C, HW) view: a free reshape of NCHW.  Logits stay in
    # their native dtype (bf16 streams at half the HBM bytes); the f32 upcast
    # happens per-chunk in-kernel.
    x = score.reshape(n, c, hw)
    # Targets: int8 when labels fit (C<=127, ignore_label in int8 range) --
    # cuts streamed HBM bytes ~25% for small-C bf16 inputs (biggest on v5e).
    tgt_dtype = jnp.int8 if (c <= 127 and -128 <= ignore_label <= 127) else jnp.int32
    t = target.reshape(n, 1, hw).astype(tgt_dtype)
    wvec = weight.reshape(c, 1).astype(jnp.float32)

    # CHUNK bounds live f32 intermediates; TILE sets DMA granularity.  TILE is
    # always a whole number of lane-aligned chunks so in-kernel slices never
    # run off the block buffer; the ragged tail past hw is masked in-kernel.
    chunk = min(chunk_pixels, tile_pixels, hw)
    if chunk < hw:
        chunk = max(128, (chunk // 128) * 128)
        tile_hw = max(chunk, (min(tile_pixels, hw) // chunk) * chunk)
    else:
        tile_hw = hw                       # single chunk covers every pixel
    n_chunks = tile_hw // chunk
    grid = (n, pl.cdiv(hw, tile_hw))

    # VMEM budget: 2x double-buffered input blocks + (2,CHUNK) scratch + the
    # in-flight chunk temporaries; floor above v5e's 16 MiB default scoped
    # limit, ceiling below v7x's 64 MiB physical VMEM.
    block_bytes = c * tile_hw * x.dtype.itemsize + tile_hw * t.dtype.itemsize
    vmem_bytes = 2 * block_bytes + 2 * chunk * 4 + 24 * c * chunk + (4 << 20)
    vmem_limit = int(min(max(vmem_bytes, 32 << 20), 56 << 20))

    kernel = functools.partial(_focal_ce_kernel, ignore_label=ignore_label,
                               hw=hw, chunk=chunk, n_chunks=n_chunks)

    num, den = pl.pallas_call(
        kernel,
        out_shape=(jax.ShapeDtypeStruct((n, 1, 1), jnp.float32),
                   jax.ShapeDtypeStruct((n, 1, 1), jnp.float32)),
        grid_spec=pltpu.PrefetchScalarGridSpec(
            num_scalar_prefetch=0,
            grid=grid,
            in_specs=[
                pl.BlockSpec((1, c, tile_hw), lambda ni, j: (ni, 0, j)),  # logits
                pl.BlockSpec((1, 1, tile_hw), lambda ni, j: (ni, 0, j)),  # targets
                pl.BlockSpec((c, 1), lambda ni, j: (0, 0)),               # class w
            ],
            out_specs=(
                pl.BlockSpec((1, 1, 1), lambda ni, j: (ni, 0, 0)),  # per-image num
                pl.BlockSpec((1, 1, 1), lambda ni, j: (ni, 0, 0)),  # per-image den
            ),
            scratch_shapes=[pltpu.VMEM((2, chunk), jnp.float32)],
        ),
        # Per-image partial outputs make the batch axis safely parallel (both
        # v7x TensorCores); the pixel axis feeds the accumulator -> arbitrary.
        compiler_params=pltpu.CompilerParams(
            dimension_semantics=("parallel", "arbitrary"),
            vmem_limit_bytes=vmem_limit),
    )(x, t, wvec)

    # F.cross_entropy(weight=..., reduction='mean') = sum(w_i * nll_i) / sum(w_i)
    # (if every pixel is ignore_label, den == 0 -> NaN, same as the reference).
    ce = jnp.sum(num) / jnp.sum(den)
    logpt = -ce
    pt = jnp.exp(logpt)
    # The focal modulation applies to the *aggregate* mean CE, exactly as in
    # the quoted PyTorch module (not a per-pixel focal loss).
    loss = -((1.0 - pt) ** gamma) * logpt
    # loss is a scalar, so .mean() and .sum() coincide (size_average no-op).
    return loss


def _reference(score, target, weight, gamma=2, ignore_label=-1):
    """Pure-JAX reference of the same math for sanity checking."""
    n, c, ph, pw = score.shape
    x = jnp.transpose(score, (0, 2, 3, 1)).reshape(-1, c).astype(jnp.float32)
    t = target.reshape(-1).astype(jnp.int32)
    logp = jax.nn.log_softmax(x, axis=-1)
    valid = (t != ignore_label)
    t_safe = jnp.where(valid, t, 0)
    logpt_i = jnp.take_along_axis(logp, t_safe[:, None], axis=-1)[:, 0]
    w_i = weight[t_safe]
    vf = valid.astype(jnp.float32)
    ce = jnp.sum(-logpt_i * w_i * vf) / jnp.sum(w_i * vf)
    logpt = -ce
    pt = jnp.exp(logpt)
    return -((1.0 - pt) ** gamma) * logpt


if __name__ == "__main__":
    key = jax.random.PRNGKey(0)
    k1, k2, k3, k4 = jax.random.split(key, 4)

    # ---- case 1: module-sized example (single tile, single chunk) ----
    N, C, H, W = 2, 4, 16, 16
    score = jax.random.normal(k1, (N, C, H, W), dtype=jnp.float32)
    target = jax.random.randint(k2, (N, H, W), 0, C, dtype=jnp.int32)
    target = target.at[:, 0, :].set(-1)              # some ignore_label pixels
    weight = jnp.linspace(0.5, 1.5, C, dtype=jnp.float32)

    loss = focal_loss_2d(score, target, weight,
                         gamma=2, ignore_label=-1, size_average=True)
    loss = jax.block_until_ready(loss)
    ref = _reference(score, target, weight, gamma=2, ignore_label=-1)
    assert jnp.allclose(loss, ref, rtol=1e-5, atol=1e-5), (loss, ref)

    # ---- case 2: multi-tile + multi-chunk + ragged-tail masking path ----
    H2, W2 = 18, 18                       # hw = 324 -> tile 256, chunk 128
    score2 = jax.random.normal(k3, (N, C, H2, W2), dtype=jnp.float32)
    target2 = jax.random.randint(k4, (N, H2, W2), 0, C, dtype=jnp.int32)
    target2 = target2.at[:, 0, :].set(-1)
    loss2 = focal_loss_2d(score2, target2, weight,
                          gamma=2, ignore_label=-1, size_average=True,
                          tile_pixels=256, chunk_pixels=128)
    loss2 = jax.block_until_ready(loss2)
    ref2 = _reference(score2, target2, weight, gamma=2, ignore_label=-1)
    assert jnp.allclose(loss2, ref2, rtol=1e-5, atol=1e-5), (loss2, ref2)

    print("KERNEL_OK")
</pallas_src>

<mosaic_0001>
module attributes {stable_mosaic.version = 11 : i64} {
  func.func @_focal_ce_kernel(%arg0: i32, %arg1: i32, %arg2: memref<1x4x256xf32, #tpu.memory_space<vmem>>, %arg3: memref<1x1x256xi8, #tpu.memory_space<vmem>>, %arg4: memref<4x1xf32, #tpu.memory_space<vmem>>, %arg5: memref<1x1x1xf32, #tpu.memory_space<vmem>>, %arg6: memref<1x1x1xf32, #tpu.memory_space<vmem>>, %arg7: memref<2x256xf32, #tpu.memory_space<vmem>>) attributes {dimension_semantics = [#tpu.dimension_semantics<parallel>, #tpu.dimension_semantics<arbitrary>], iteration_bounds = array<i64: 2, 1>, scalar_prefetch = 0 : i64, scratch_operands = 1 : i64, tpu.core_type = #tpu.core_type<tc>, window_params = [{transform_indices = @transform_0, window_bounds = array<i64: 1, 4, 256>}, {transform_indices = @transform_1, window_bounds = array<i64: 1, 1, 256>}, {pipeline_mode = #tpu.pipeline_mode<synchronous>, transform_indices = @transform_2, window_bounds = array<i64: 4, 1>}, {transform_indices = @transform_3, window_bounds = array<i64: 1, 1, 1>}, {transform_indices = @transform_4, window_bounds = array<i64: 1, 1, 1>}]} {
    %c0_i32 = arith.constant 0 : i32
    %0 = arith.cmpi eq, %arg1, %c0_i32 : i32
    %1 = arith.extui %0 : i1 to i32
    %c0_i32_0 = arith.constant 0 : i32
    %2 = arith.cmpi ne, %1, %c0_i32_0 : i32
    scf.if %2 {
      %cst_22 = arith.constant 0.000000e+00 : f32
      %60 = vector.broadcast %cst_22 : f32 to vector<2x256xf32>
      %c0_23 = arith.constant 0 : index
      %c0_24 = arith.constant 0 : index
      %61 = vector.load %arg7[%c0_23, %c0_24] : memref<2x256xf32, #tpu.memory_space<vmem>>, vector<2x256xf32>
      tpu.vector_store %arg7[%c0_23, %c0_24], %60 {strides = array<i32>} : memref<2x256xf32, #tpu.memory_space<vmem>>, vector<2x256xf32>,
    } else {
    }
    %c0 = arith.constant 0 : index
    %c0_1 = arith.constant 0 : index
    %3 = vector.load %arg4[%c0, %c0_1] : memref<4x1xf32, #tpu.memory_space<vmem>>, vector<4x1xf32>
    %4 = tpu.iota {dimensions = array<i32: 0>} : vector<4x1xi32>
    %5 = tpu.iota {dimensions = array<i32: 1>} : vector<1x256xi32>
    %c256_i32 = arith.constant 256 : i32
    %6 = arith.muli %arg1, %c256_i32 : i32
    %c0_i32_2 = arith.constant 0 : i32
    %c256_i32_3 = arith.constant 256 : i32
    %7 = arith.muli %c0_i32_2, %c256_i32_3 : i32
    %8 = tpu.assume_multiple %7, 256 : i32
    %c0_4 = arith.constant 0 : index
    %c0_5 = arith.constant 0 : index
    %9 = arith.index_cast %8 : i32 to index
    %10 = vector.load %arg2[%c0_4, %c0_5, %9] : memref<1x4x256xf32, #tpu.memory_space<vmem>>, vector<1x4x256xf32>
    %11 = vector.shape_cast %10 : vector<1x4x256xf32> to vector<4x256xf32>
    %c0_6 = arith.constant 0 : index
    %c0_7 = arith.constant 0 : index
    %12 = arith.index_cast %8 : i32 to index
    %13 = vector.load %arg3[%c0_6, %c0_7, %12] : memref<1x1x256xi8, #tpu.memory_space<vmem>>, vector<1x1x256xi8>
    %14 = vector.shape_cast %13 : vector<1x1x256xi8> to vector<1x256xi8>
    %15 = arith.extsi %14 : vector<1x256xi8> to vector<1x256xi32>
    %cst = arith.constant dense<0xFF800000> : vector<256xf32>
    %16 = vector.multi_reduction <maximumf>, %11, %cst [0] : vector<4x256xf32> to vector<256xf32>
    %17 = vector.shape_cast %16 : vector<256xf32> to vector<1x256xf32>
    %18 = vector.broadcast %17 : vector<1x256xf32> to vector<4x256xf32>
    %19 = arith.subf %11, %18 : vector<4x256xf32>
    %20 = math.exp %19 : vector<4x256xf32>
    %cst_8 = arith.constant dense<0.000000e+00> : vector<256xf32>
    %21 = vector.multi_reduction <add>, %20, %cst_8 [0] : vector<4x256xf32> to vector<256xf32>
    %22 = vector.shape_cast %21 : vector<256xf32> to vector<1x256xf32>
    %23 = math.log %22 : vector<1x256xf32>
    %24 = vector.broadcast %4 : vector<4x1xi32> to vector<4x256xi32>
    %25 = vector.broadcast %15 : vector<1x256xi32> to vector<4x256xi32>
    %26 = arith.cmpi eq, %24, %25 : vector<4x256xi32>
    %cst_9 = arith.constant 0.000000e+00 : f32
    %27 = vector.broadcast %cst_9 : f32 to vector<4x256xf32>
    %28 = arith.select %26, %11, %27 : vector<4x256xi1>, vector<4x256xf32>
    %cst_10 = arith.constant dense<0.000000e+00> : vector<256xf32>
    %29 = vector.multi_reduction <add>, %28, %cst_10 [0] : vector<4x256xf32> to vector<256xf32>
    %30 = vector.shape_cast %29 : vector<256xf32> to vector<1x256xf32>
    %cst_11 = arith.constant 0.000000e+00 : f32
    %31 = vector.shape_cast %3 : vector<4x1xf32> to vector<4x1xf32>
    %32 = vector.broadcast %31 : vector<4x1xf32> to vector<4x256xf32>
    %33 = vector.broadcast %cst_11 : f32 to vector<4x256xf32>
    %34 = arith.select %26, %32, %33 : vector<4x256xi1>, vector<4x256xf32>
    %cst_12 = arith.constant dense<0.000000e+00> : vector<256xf32>
    %35 = vector.multi_reduction <add>, %34, %cst_12 [0] : vector<4x256xf32> to vector<256xf32>
    %36 = vector.shape_cast %35 : vector<256xf32> to vector<1x256xf32>
    %c256_i32_13 = arith.constant 256 : i32
    %37 = arith.muli %c0_i32_2, %c256_i32_13 : i32
    %38 = arith.addi %6, %37 : i32
    %39 = vector.broadcast %38 : i32 to vector<1x256xi32>
    %40 = arith.addi %39, %5 : vector<1x256xi32>
    %c-1_i32 = arith.constant -1 : i32
    %41 = vector.broadcast %c-1_i32 : i32 to vector<1x256xi32>
    %42 = arith.cmpi ne, %15, %41 : vector<1x256xi32>
    %c256_i32_14 = arith.constant 256 : i32
    %43 = vector.broadcast %c256_i32_14 : i32 to vector<1x256xi32>
    %44 = arith.cmpi slt, %40, %43 : vector<1x256xi32>
    %45 = arith.andi %42, %44 : vector<1x256xi1>
    %46 = arith.addf %17, %23 : vector<1x256xf32>
    %47 = arith.subf %46, %30 : vector<1x256xf32>
    %48 = arith.mulf %47, %36 : vector<1x256xf32>
    %49 = tpu.concatenate %48, %36 in 0 : vector<1x256xf32>, vector<1x256xf32> -> vector<2x256xf32>
    %c0_15 = arith.constant 0 : index
    %c0_16 = arith.constant 0 : index
    %50 = vector.load %arg7[%c0_15, %c0_16] : memref<2x256xf32, #tpu.memory_space<vmem>>, vector<2x256xf32>
    %cst_17 = arith.constant 0.000000e+00 : f32
    %51 = vector.shape_cast %45 : vector<1x256xi1> to vector<1x256xi1>
    %52 = vector.broadcast %51 : vector<1x256xi1> to vector<2x256xi1>
    %53 = vector.broadcast %cst_17 : f32 to vector<2x256xf32>
    %54 = arith.select %52, %49, %53 : vector<2x256xi1>, vector<2x256xf32>
    %55 = arith.addf %50, %54 : vector<2x256xf32>
    %c0_18 = arith.constant 0 : index
    %c0_19 = arith.constant 0 : index
    %56 = vector.load %arg7[%c0_18, %c0_19] : memref<2x256xf32, #tpu.memory_space<vmem>>, vector<2x256xf32>
    tpu.vector_store %arg7[%c0_18, %c0_19], %55 {strides = array<i32>} : memref<2x256xf32, #tpu.memory_space<vmem>>, vector<2x256xf32>,
    %c1_i32 = arith.constant 1 : i32
    %c0_i32_20 = arith.constant 0 : i32
    %57 = arith.cmpi eq, %arg1, %c0_i32_20 : i32
    %58 = arith.extui %57 : i1 to i32
    %c0_i32_21 = arith.constant 0 : i32
    %59 = arith.cmpi ne, %58, %c0_i32_21 : i32
    scf.if %59 {
      %c0_22 = arith.constant 0 : index
      %c0_23 = arith.constant 0 : index
      %60 = vector.load %arg7[%c0_22, %c0_23] : memref<2x256xf32, #tpu.memory_space<vmem>>, vector<2x256xf32>
      %cst_24 = arith.constant dense<0.000000e+00> : vector<2xf32>
      %61 = vector.multi_reduction <add>, %60, %cst_24 [1] : vector<2x256xf32> to vector<2xf32>
      %62 = vector.shape_cast %61 : vector<2xf32> to vector<2x1xf32>
      %63 = vector.extract_strided_slice %62 {offsets = [0, 0], sizes = [1, 1], strides = [1, 1]} : vector<2x1xf32> to vector<1x1xf32>
      %64 = vector.shape_cast %63 : vector<1x1xf32> to vector<1x1x1xf32>
      %c0_25 = arith.constant 0 : index
      %c0_26 = arith.constant 0 : index
      %c0_27 = arith.constant 0 : index
      %65 = vector.load %arg5[%c0_25, %c0_26, %c0_27] : memref<1x1x1xf32, #tpu.memory_space<vmem>>, vector<1x1x1xf32>
      tpu.vector_store %arg5[%c0_25, %c0_26, %c0_27], %64 {strides = array<i32>} : memref<1x1x1xf32, #tpu.memory_space<vmem>>, vector<1x1x1xf32>,
      %66 = vector.extract_strided_slice %62 {offsets = [1, 0], sizes = [1, 1], strides = [1, 1]} : vector<2x1xf32> to vector<1x1xf32>
      %67 = vector.shape_cast %66 : vector<1x1xf32> to vector<1x1x1xf32>
      %c0_28 = arith.constant 0 : index
      %c0_29 = arith.constant 0 : index
      %c0_30 = arith.constant 0 : index
      %68 = vector.load %arg6[%c0_28, %c0_29, %c0_30] : memref<1x1x1xf32, #tpu.memory_space<vmem>>, vector<1x1x1xf32>
      tpu.vector_store %arg6[%c0_28, %c0_29, %c0_30], %67 {strides = array<i32>} : memref<1x1x1xf32, #tpu.memory_space<vmem>>, vector<1x1x1xf32>,
    } else {
    }
    return
  }
  func.func @transform_0(%arg0: i32, %arg1: i32) -> (i32, i32, i32) {
    %c0_i32 = arith.constant 0 : i32
    %c0_i32_0 = arith.constant 0 : i32
    return %arg0, %c0_i32, %arg1 : i32, i32, i32
  }
  func.func @transform_1(%arg0: i32, %arg1: i32) -> (i32, i32, i32) {
    %c0_i32 = arith.constant 0 : i32
    %c0_i32_0 = arith.constant 0 : i32
    return %arg0, %c0_i32, %arg1 : i32, i32, i32
  }
  func.func @transform_2(%arg0: i32, %arg1: i32) -> (i32, i32) {
    %c0_i32 = arith.constant 0 : i32
    %c0_i32_0 = arith.constant 0 : i32
    %c0_i32_1 = arith.constant 0 : i32
    return %c0_i32, %c0_i32_0 : i32, i32
  }
  func.func @transform_3(%arg0: i32, %arg1: i32) -> (i32, i32, i32) {
    %c0_i32 = arith.constant 0 : i32
    %c0_i32_0 = arith.constant 0 : i32
    %c0_i32_1 = arith.constant 0 : i32
    return %arg0, %c0_i32, %c0_i32_0 : i32, i32, i32
  }
  func.func @transform_4(%arg0: i32, %arg1: i32) -> (i32, i32, i32) {
    %c0_i32 = arith.constant 0 : i32
    %c0_i32_0 = arith.constant 0 : i32
    %c0_i32_1 = arith.constant 0 : i32
    return %arg0, %c0_i32, %c0_i32_0 : i32, i32, i32
  }
}

</mosaic_0001>

<llo_original>
// kernel: tpu_custom_call.1
$region0: #{tpu_custom_call.1}
  #allocation0 [shape = 'u32[]', space=smem, size = 0x4, offset = 0x4, fixed_abs, tag = 'smem constant byte address 0x4 - core index']
  #allocation1 [shape = 'u32[72,128]{1,0:T(1,128)}', space=vmem, size = 0x9000, scoped, tag = 'internal scratch']
  #allocation2 [shape = 'f32[2,256]{1,0:T(2,128)}', space=vmem, size = 0x800, scoped, tag = 'scratch operand']
  %s0 = inlined_call_operand.hbm [shape: f32[2,4,256], index: 0, kind: input, shape index: {}]
  %s1 = inlined_call_operand.vmem [shape: s8[2,1,256], index: 1, kind: input, shape index: {}]
  %s2 = inlined_call_operand.vmem [shape: f32[4,1], index: 2, kind: input, shape index: {}]
  %s3 = inlined_call_operand.vmem [shape: f32[2,1,1], index: 3, kind: output, shape index: {0}]
  %s4 = inlined_call_operand.vmem [shape: f32[2,1,1], index: 4, kind: output, shape index: {1}]
  %5 = xla_tuple %s3, %s4
  %s6 = sld [smem:[#allocation0]]
  $region65: #{tpu_custom_call.1} parent=0
    _
  %s8 = ssub.s32 1, %s6
  %s9 = scalar_select 0, %s8, %s6
  $region1: #{tpu_custom_call.1} parent=0
    #allocation3 [shape = 'u8[8192]{0}', space=vmem, size = 0x2000, scoped, tag = 'input window, operand 0']
    #allocation4 [shape = 's32[2]{0}', space=sflag, size = 0x8, scoped, tag = 'scoped memory for tpu_custom_call.1']
    %10 = vsyncpa [#allocation4], 0
    %s11 = scalar_lea.sflag [#allocation4], 1
    %12 = vsyncpa %s11, 0
    loop: start=0, step=1, limit=4
    $region2: #{tpu_custom_call.1} parent=1 // loop_pre_header
      _
    $region3: #{tpu_custom_call.1} parent=1 // loop_header
      %s14 = sphi 0, %s18
      %p15 = scmp.ge.s32.totalorder %s14, 4
      %s21 = sphi 0, %s33
      %s22 = sphi 0, %s29
      %s23 = sphi 0, %s21
      %s24 = sphi 0, %s22
      %s25 = sphi 0, %s23
      %s26 = sphi 0, %s24
      %s38 = sphi 0, %s40
      %s41 = sphi 0, %s38
      %s42 = sphi 0, %s41
      %s58 = sphi 0, %s42
      %s66 = sphi 0, %s68
      %s69 = sphi 0, %s66
      %s70 = sphi 0, %s69
      %s86 = sphi 0, %s70
      %s90 = sphi 0, %s90
      %s92 = sphi 0, %s90
      %s93 = sphi 0, %s92
      %s107 = sphi 0, %s93
      %s113 = sphi 0, %s115
      %s116 = sphi 0, %s113
      %s117 = sphi 0, %s116
      %s133 = sphi 0, %s117
      %s139 = sphi 0, %s141
      %s142 = sphi 0, %s139
      %s143 = sphi 0, %s142
      %s159 = sphi 0, %s143
    $region4: #{tpu_custom_call.1} parent=1 // loop_header_branch
      %17 = sbr.rel (%p15) target = $region8
    $region5: #{tpu_custom_call.1} parent=1 // loop_body
      %s19 = ssub.s32 %s14, 1
      %s20 = ssub.s32 %s14, 2
      %s27 = sadd.s32 1, %s22
      %p28 = scmp.ge.s32.totalorder %s27, 1
      %s29 = scalar_select %p28, 0, %s27
      %s30 = sadd.s32 1, %s21
      %s31 = scalar_select %p28, %s30, %s21
      %p32 = scmp.ge.s32.totalorder %s31, 2
      %s33 = scalar_select %p32, 0, %s31
      %s34 = ssub.s32 %s21, %s33
      %s35 = ssub.s32 %s22, %s29
      %s36 = sor.u32 %s34, %s35
      %p37 = scmp.eq.s32.totalorder %s36, 0
      %s39 = sadd.s32 %s38, 1
      %s40 = scalar_select %p37, %s38, %s39
      %p43 = pneg %p37
      %p44 = scmp.eq.s32.totalorder %s14, 1
      %p45 = por %p43, %p44
      %p46 = scmp.ne.s32.totalorder %s38, %s41
      %p47 = scmp.eq.s32.totalorder %s14, 0
      %p48 = por %p46, %p47
      %p49 = scmp.ne.s32.totalorder %s38, %s41
      %p50 = scmp.eq.s32.totalorder %s19, 1
      %p51 = por %p49, %p50
      %p52 = scmp.ne.s32.totalorder %s41, %s42
      %p53 = scmp.eq.s32.totalorder %s19, 0
      %p54 = por %p52, %p53
      %p55 = scmp.ne.s32.totalorder %s41, %s42
      %p56 = scmp.eq.s32.totalorder %s20, 1
      %p57 = por %p55, %p56
      %p59 = scmp.ne.s32.totalorder %s42, %s58
      %p60 = scmp.eq.s32.totalorder %s20, 0
      %p61 = por %p59, %p60
      %s62 = ssub.s32 %s21, %s33
      %s63 = ssub.s32 %s22, %s29
      %s64 = sor.u32 %s62, %s63
      %p65 = scmp.eq.s32.totalorder %s64, 0
      %s67 = sadd.s32 %s66, 1
      %s68 = scalar_select %p65, %s66, %s67
      %p71 = pneg %p65
      %p72 = scmp.eq.s32.totalorder %s14, 1
      %p73 = por %p71, %p72
      %p74 = scmp.ne.s32.totalorder %s66, %s69
      %p75 = scmp.eq.s32.totalorder %s14, 0
      %p76 = por %p74, %p75
      %p77 = scmp.ne.s32.totalorder %s66, %s69
      %p78 = scmp.eq.s32.totalorder %s19, 1
      %p79 = por %p77, %p78
      %p80 = scmp.ne.s32.totalorder %s69, %s70
      %p81 = scmp.eq.s32.totalorder %s19, 0
      %p82 = por %p80, %p81
      %p83 = scmp.ne.s32.totalorder %s69, %s70
      %p84 = scmp.eq.s32.totalorder %s20, 1
      %p85 = por %p83, %p84
      %p87 = scmp.ne.s32.totalorder %s70, %s86
      %p88 = scmp.eq.s32.totalorder %s20, 0
      %p89 = por %p87, %p88
      %s91 = sadd.s32 %s90, 1
      %p94 = scmp.eq.s32.totalorder %s14, 1
      %p95 = scmp.ne.s32.totalorder %s90, %s92
      %p96 = scmp.eq.s32.totalorder %s14, 0
      %p97 = por %p95, %p96
      %p98 = scmp.ne.s32.totalorder %s90, %s92
      %p99 = scmp.eq.s32.totalorder %s19, 1
      %p100 = por %p98, %p99
      %p101 = scmp.ne.s32.totalorder %s92, %s93
      %p102 = scmp.eq.s32.totalorder %s19, 0
      %p103 = por %p101, %p102
      %p104 = scmp.ne.s32.totalorder %s92, %s93
      %p105 = scmp.eq.s32.totalorder %s20, 1
      %p106 = por %p104, %p105
      %p108 = scmp.ne.s32.totalorder %s93, %s107
      %p109 = scmp.eq.s32.totalorder %s20, 0
      %p110 = por %p108, %p109
      %s111 = ssub.s32 %s21, %s33
      %p112 = scmp.eq.s32.totalorder %s111, 0
      %s114 = sadd.s32 %s113, 1
      %s115 = scalar_select %p112, %s113, %s114
      %p118 = pneg %p112
      %p119 = scmp.eq.s32.totalorder %s14, 1
      %p120 = por %p118, %p119
      %p121 = scmp.ne.s32.totalorder %s113, %s116
      %p122 = scmp.eq.s32.totalorder %s14, 0
      %p123 = por %p121, %p122
      %p124 = scmp.ne.s32.totalorder %s113, %s116
      %p125 = scmp.eq.s32.totalorder %s19, 1
      %p126 = por %p124, %p125
      %p127 = scmp.ne.s32.totalorder %s116, %s117
      %p128 = scmp.eq.s32.totalorder %s19, 0
      %p129 = por %p127, %p128
      %p130 = scmp.ne.s32.totalorder %s116, %s117
      %p131 = scmp.eq.s32.totalorder %s20, 1
      %p132 = por %p130, %p131
      %p134 = scmp.ne.s32.totalorder %s117, %s133
      %p135 = scmp.eq.s32.totalorder %s20, 0
      %p136 = por %p134, %p135
      %s137 = ssub.s32 %s21, %s33
      %p138 = scmp.eq.s32.totalorder %s137, 0
      %s140 = sadd.s32 %s139, 1
      %s141 = scalar_select %p138, %s139, %s140
      %p144 = pneg %p138
      %p145 = scmp.eq.s32.totalorder %s14, 1
      %p146 = por %p144, %p145
      %p147 = scmp.ne.s32.totalorder %s139, %s142
      %p148 = scmp.eq.s32.totalorder %s14, 0
      %p149 = por %p147, %p148
      %p150 = scmp.ne.s32.totalorder %s139, %s142
      %p151 = scmp.eq.s32.totalorder %s19, 1
      %p152 = por %p150, %p151
      %p153 = scmp.ne.s32.totalorder %s142, %s143
      %p154 = scmp.eq.s32.totalorder %s19, 0
      %p155 = por %p153, %p154
      %p156 = scmp.ne.s32.totalorder %s142, %s143
      %p157 = scmp.eq.s32.totalorder %s20, 1
      %p158 = por %p156, %p157
      %p160 = scmp.ne.s32.totalorder %s143, %s159
      %p161 = scmp.eq.s32.totalorder %s20, 0
      %p162 = por %p160, %p161
      %p163 = scmp.le.s32.totalorder 1, %s14
      %p164 = scmp.lt.s32.totalorder %s14, 3
      %p165 = pnand %p163, %p164
      %p166 = pneg %p165
      // Predicated region
      $region9: #{tpu_custom_call.1} parent=5 // pred_check
        _
      $region10: #{tpu_custom_call.1} parent=5 // pred_check_branch
        %168 = sbr.rel (%p165) target = $region12
      $region11: #{tpu_custom_call.1} parent=5 // pred_region
        %s169 = ssub.s32 %s14, 1
        // Predicated region
        $region13: #{tpu_custom_call.1} parent=11 // pred_check
          %p170 = pneg %p103
        $region14: #{tpu_custom_call.1} parent=11 // pred_check_branch
          %172 = sbr.rel (%p170) target = $region16
        $region15: #{tpu_custom_call.1} parent=11 // pred_region
          _
        $region16: #{tpu_custom_call.1} parent=11 // pred_fallthru
          _
      $region12: #{tpu_custom_call.1} parent=5 // pred_fallthru
        _
      %p173 = scmp.lt.s32.totalorder %s14, 2
      // Predicated region
      $region17: #{tpu_custom_call.1} parent=5 // pred_check
        %p174 = pneg %p173
      $region18: #{tpu_custom_call.1} parent=5 // pred_check_branch
        %176 = sbr.rel (%p174) target = $region20
      $region19: #{tpu_custom_call.1} parent=5 // pred_region
        // Predicated region
        $region21: #{tpu_custom_call.1} parent=19 // pred_check
          %p177 = pneg %p48
        $region22: #{tpu_custom_call.1} parent=19 // pred_check_branch
          %179 = sbr.rel (%p177) target = $region24
        $region23: #{tpu_custom_call.1} parent=19 // pred_region
          %s180 = sand.u32 %s38, 1
          %s181 = scalar_lea.sflag [#allocation4], %s180
          %s182 = sand.u32 %s38, 1
          %s183 = smul.addr %s182, 8
          %s184 = scalar_lea.vmem [#allocation3], %s183
          %s185 = smul.u32 2, %s22
          %187 = vsyncadd %s181, 0
          %s188 = smul.addr %s21, 2
          %s189 = sadd.s32 %s185, %s188
          %s190 = smul.addr %s189, 4
          %s191 = scalar_lea.hbm %s0, %s190
          %s193 = sshll.u32 %s191, 4
          %s194 = int_to_ptr.hbm [resolvable:$true] %s193
          %s195 = sshll.u32 %s184, 4
          %s196 = int_to_ptr.vmem [resolvable:$true] %s195
          %198 = dma.hbm_to_vmem [thread:$0]  %s194, 128, %s196, %s181
        $region24: #{tpu_custom_call.1} parent=19 // pred_fallthru
          _
        // Predicated region
        $region25: #{tpu_custom_call.1} parent=19 // pred_check
          %p199 = pneg %p76
        $region26: #{tpu_custom_call.1} parent=19 // pred_check_branch
          %201 = sbr.rel (%p199) target = $region28
        $region27: #{tpu_custom_call.1} parent=19 // pred_region
          %s202 = smul.u32 2, %s22
          %p203 = scmp.lt.s32.totalorder %s21, 1
          %s204 = scalar_select %p203, %s21, 1
          %p205 = scmp.lt.s32.totalorder %s202, 1
          %s206 = scalar_select %p205, %s202, 1
          %s207 = smul.addr %s204, 2
          %s208 = sadd.s32 %s206, %s207
          %s209 = scalar_lea.vmem %s1, %s208
          %s210 = smul.u32 2, %s22
        $region28: #{tpu_custom_call.1} parent=19 // pred_fallthru
          _
      $region20: #{tpu_custom_call.1} parent=5 // pred_fallthru
        _
      %p211 = scmp.le.s32.totalorder 1, %s14
      %p212 = scmp.lt.s32.totalorder %s14, 3
      %p213 = pnand %p211, %p212
      %p214 = pneg %p213
      // Predicated region
      $region29: #{tpu_custom_call.1} parent=5 // pred_check
        _
      $region30: #{tpu_custom_call.1} parent=5 // pred_check_branch
        %216 = sbr.rel (%p213) target = $region32
      $region31: #{tpu_custom_call.1} parent=5 // pred_region
        %s217 = ssub.s32 %s14, 1
        %s218 = sand.u32 %s41, 1
        %s219 = scalar_lea.sflag [#allocation4], %s218
        %s220 = sand.u32 %s41, 1
        %s221 = smul.addr %s220, 8
        %s222 = scalar_lea.vmem [#allocation3], %s221
        // Predicated region
        $region33: #{tpu_custom_call.1} parent=31 // pred_check
          %p223 = pneg %p54
        $region34: #{tpu_custom_call.1} parent=31 // pred_check_branch
          %225 = sbr.rel (%p223) target = $region36
        $region35: #{tpu_custom_call.1} parent=31 // pred_region
          %227 = dma.done %s219, 128
        $region36: #{tpu_custom_call.1} parent=31 // pred_fallthru
          _
        %s228 = sand.u32 %s41, 1
        %s229 = scalar_lea.sflag [#allocation4], %s228
        %s230 = sand.u32 %s41, 1
        %s231 = smul.addr %s230, 8
        %s232 = scalar_lea.vmem [#allocation3], %s231
        %p233 = pneg %p54
        %p234 = pneg %p51
        %s235 = smul.u32 2, %s24
        %p236 = scmp.lt.s32.totalorder %s23, 1
        %s237 = scalar_select %p236, %s23, 1
        %p238 = scmp.lt.s32.totalorder %s235, 1
        %s239 = scalar_select %p238, %s235, 1
        %s240 = smul.addr %s237, 2
        %s241 = sadd.s32 %s239, %s240
        %s242 = scalar_lea.vmem %s1, %s241
        %p243 = pneg %p82
        %p244 = pneg %p79
        %p245 = pneg %p103
        %p246 = pneg %p100
        %p247 = pneg %p129
        %p248 = pneg %p126
        %p249 = scmp.lt.s32.totalorder %s23, 1
        %s250 = scalar_select %p249, %s23, 1
        %s251 = scalar_lea.vmem %s3, %s250
        %p252 = pneg %p155
        %p253 = pneg %p152
        %p254 = scmp.lt.s32.totalorder %s23, 1
        %s255 = scalar_select %p254, %s23, 1
        %s256 = scalar_lea.vmem %s4, %s255
        %s257 = smul.u32 2, %s24
        %s258 = smul.u32 2, %s24
        %p259 = scmp.lt.s32.totalorder %s23, 1
        %s260 = scalar_select %p259, %s23, 1
        %p261 = scmp.lt.s32.totalorder %s258, 1
        %s262 = scalar_select %p261, %s258, 1
        %s263 = smul.addr %s260, 2
        %s264 = sadd.s32 %s262, %s263
        %s265 = scalar_lea.vmem %s1, %s264
        %s266 = smul.u32 2, %s24
        %p267 = scmp.lt.s32.totalorder %s23, 1
        %s268 = scalar_select %p267, %s23, 1
        %s269 = scalar_lea.vmem %s3, %s268
        %p270 = scmp.lt.s32.totalorder %s23, 1
        %s271 = scalar_select %p270, %s23, 1
        %s272 = scalar_lea.vmem %s4, %s271
        %p273 = scmp.eq.s32.totalorder %s24, 0
        // Predicated region
        $region37: #{tpu_custom_call.1} parent=31 // pred_check
          %p274 = pneg %p273
        $region38: #{tpu_custom_call.1} parent=31 // pred_check_branch
          %276 = sbr.rel (%p274) target = $region40
        $region39: #{tpu_custom_call.1} parent=31 // pred_region
          %277 = vst [vmem:[#allocation2] sm:$0xf] 0.0
        $region40: #{tpu_custom_call.1} parent=31 // pred_fallthru
          _
        %v278 = vld [vmem:[%s2] sm:$0xf]
        %v279 = vlaneseq
        %v280 = vshrl.u32 %v279, 7
        %v281 = vlaneseq
        %v282 = vand.u32 %v281, 127
        %v283 = vadd.s32 %v282, 128
        %s284 = smul.u32 %s24, 256
        %v285 = vld [vmem:[%s222] sm:$0xff]
        %v286 = vld [vmem:[%s265] sm:$0x3]
        %v287 = vunpack.c.0.s8 %v286
        %289 = vst [vmem:[#allocation1] ss:$2 sm:$0xff] %v285
        %v290 = vld.sshfl [vmem:[#allocation1] sm:$0xff pattern:$0x75316420]
        %v291 = vld.sshfl [vmem:[#allocation1 + $0x8] sm:$0xff pattern:$0x75316420]
        %vm294 = vcmask 1043456
        %v295 = vsel %vm294, %v290, -inf
        %v296 = vrot.slane %v295, 4
        %v297 = vmax.f32 %v295, %v296
        %v298 = vrot.slane %v297, 2
        %v299 = vmax.f32 %v297, %v298
        %v300 = vrot.slane %v299, 1
        %v301 = vmax.f32 %v299, %v300
        %v302 = vsel %vm294, %v291, -inf
        %v303 = vrot.slane %v302, 4
        %v304 = vmax.f32 %v302, %v303
        %v305 = vrot.slane %v304, 2
        %v306 = vmax.f32 %v304, %v305
        %v307 = vrot.slane %v306, 1
        %v308 = vmax.f32 %v306, %v307
        %v311 = vrot.slane %v308, 4
        %v312 = vsel %vm294, %v301, %v311
        %v314 = vsub.f32 %v285, %v312
        %v315 = vmul.f32 %v314, 1.442695
        %v316 = vpow.pop %v315
        %318 = vst [vmem:[#allocation1] ss:$2 sm:$0xff] %v316
        %v319 = vld.sshfl [vmem:[#allocation1] sm:$0xff pattern:$0x75316420]
        %v320 = vld.sshfl [vmem:[#allocation1 + $0x8] sm:$0xff pattern:$0x75316420]
        %v323 = vsel %vm294, %v319, 0.0
        %v324 = vrot.slane %v323, 4
        %v325 = vadd.f32 %v323, %v324
        %v326 = vrot.slane %v325, 2
        %v327 = vadd.f32 %v325, %v326
        %v328 = vrot.slane %v327, 1
        %v329 = vadd.f32 %v327, %v328
        %v330 = vsel %vm294, %v320, 0.0
        %v331 = vrot.slane %v330, 4
        %v332 = vadd.f32 %v330, %v331
        %v333 = vrot.slane %v332, 2
        %v334 = vadd.f32 %v332, %v333
        %v335 = vrot.slane %v334, 1
        %v336 = vadd.f32 %v334, %v335
        %v337 = vlog2.pop %v329
        %v338 = vmul.f32 %v337, 0.6931472
        %v339 = vlog2.pop %v336
        %v340 = vmul.f32 %v339, 0.6931472
        %v341 = vperm.slane %v287, 0
        %v342 = vperm.slane %v287, 4
        %v343 = vperm.slane %v341, 0
        %v344 = vperm.slane %v342, 0
        %vm345 = vcmp.eq.s32.totalorder %v280, %v343
        %vm346 = vcmp.eq.s32.totalorder %v280, %v344
        %347 = vst [vmem:[#allocation1] ss:$2 sm:$0xff] %v285
        %v348 = vld.sshfl [vmem:[#allocation1] sm:$0xff pattern:$0x75316420]
        %v349 = vld.sshfl [vmem:[#allocation1 + $0x8] sm:$0xff pattern:$0x75316420]
        %v352 = vsel %vm345, %v348, 0.0
        %v353 = vsel %vm346, %v349, 0.0
        %v354 = vsel %vm294, %v352, 0.0
        %v355 = vrot.slane %v354, 4
        %v356 = vadd.f32 %v354, %v355
        %v357 = vrot.slane %v356, 2
        %v358 = vadd.f32 %v356, %v357
        %v359 = vrot.slane %v358, 1
        %v360 = vadd.f32 %v358, %v359
        %v361 = vsel %vm294, %v353, 0.0
        %v362 = vrot.slane %v361, 4
        %v363 = vadd.f32 %v361, %v362
        %v364 = vrot.slane %v363, 2
        %v365 = vadd.f32 %v363, %v364
        %v366 = vrot.slane %v365, 1
        %v367 = vadd.f32 %v365, %v366
        %369 = vset.pattern.permute.xlu0 0
        %370 = vperm.xlu0 %369, %v278
        %v371 = vpop.permute.xlu0 %370
        %v373 = vsel %vm345, %v371, 0.0
        %v374 = vsel %vm346, %v371, 0.0
        %v375 = vsel %vm294, %v373, 0.0
        %v376 = vrot.slane %v375, 4
        %v377 = vadd.f32 %v375, %v376
        %v378 = vrot.slane %v377, 2
        %v379 = vadd.f32 %v377, %v378
        %v380 = vrot.slane %v379, 1
        %v381 = vadd.f32 %v379, %v380
        %v382 = vsel %vm294, %v374, 0.0
        %v383 = vrot.slane %v382, 4
        %v384 = vadd.f32 %v382, %v383
        %v385 = vrot.slane %v384, 2
        %v386 = vadd.f32 %v384, %v385
        %v387 = vrot.slane %v386, 1
        %v388 = vadd.f32 %v386, %v387
        %v389 = vstv %s284
        %v390 = vadd.s32 %v389, %v282
        %v391 = vadd.s32 %v389, %v283
        %vm392 = vcmp.ne.s32.totalorder %v287, 4294967295
        %vm393 = vcmp.lt.s32.totalorder %v390, 256
        %vm394 = vcmp.lt.s32.totalorder %v391, 256
        %v395 = vsel %vm393, 1, 0
        %v396 = vsel %vm394, 1, 0
        %v397 = vrot.slane %v396, 4
        %v398 = vsel %vm294, %v395, %v397
        %vm399 = vcmp.ne.s32.totalorder %v398, 0
        %vm400 = vmand %vm392, %vm399
        %v401 = vadd.f32 %v301, %v338
        %v402 = vadd.f32 %v308, %v340
        %v403 = vsub.f32 %v401, %v360
        %v404 = vsub.f32 %v402, %v367
        %v405 = vmul.f32 %v403, %v381
        %v406 = vmul.f32 %v404, %v388
        %vm407 = vcmask 1040384
        %v408 = vsel %vm407, %v405, %v381
        %v409 = vsel %vm407, %v406, %v388
        %v410 = vld [vmem:[#allocation2] sm:$0xf]
        %v411 = vsel %vm400, 1, 0
        %v412 = vperm.slane %v411, 0
        %v413 = vperm.slane %v411, 4
        %v414 = vperm.slane %v412, 0
        %v415 = vperm.slane %v413, 0
        %vm416 = vcmp.eq.s32.totalorder %v414, 1
        %vm417 = vcmp.eq.s32.totalorder %v415, 1
        %v418 = vsel %vm416, %v408, 0.0
        %v419 = vsel %vm417, %v409, 0.0
        %v422 = vrot.slane %v419, 6
        %vm423 = vcmask 1041408
        %v424 = vsel %vm423, %v418, %v422
        %v426 = vadd.f32 %v410, %v424
        %427 = vst [vmem:[#allocation2] sm:$0xf] %v426
        // Predicated region
        $region41: #{tpu_custom_call.1} parent=31 // pred_check
          %p428 = pneg %p273
        $region42: #{tpu_custom_call.1} parent=31 // pred_check_branch
          %430 = sbr.rel (%p428) target = $region44
        $region43: #{tpu_custom_call.1} parent=31 // pred_region
          %v431 = vld [vmem:[#allocation2] sm:$0xf]
          %433 = vst [vmem:[#allocation1] ss:$4 sm:$0xff] %v431
          %v434 = vld.sshfl [vmem:[#allocation1] sm:$0xff pattern:$0x73625140]
          %v435 = vld.sshfl [vmem:[#allocation1 + $0x8] sm:$0xff pattern:$0x73625140]
          %v438 = vsel %vm423, %v434, 0.0
          %v439 = vsel %vm423, %v435, 0.0
          %v440 = vadd.f32 %v438, %v439
          %441 = vadd.xlane.f32.xlu0 %v440
          %v442 = vpop.xlane.xlu0 %441
          %vm443 = vcmask 0
          %444 = vst.msk [vmem:[%s269] sm:$0x1] %vm443, %v442
          %vm445 = vcmask 1025
          %446 = vst.msk [vmem:[%s272 - $0x1] sm:$0x2] %vm445, %v442
        $region44: #{tpu_custom_call.1} parent=31 // pred_fallthru
          _
        %p447 = scmp.lt.s32.totalorder %s23, 1
        %s448 = scalar_select %p447, %s23, 1
        %s449 = scalar_lea.vmem %s3, %s448
        %p450 = scmp.lt.s32.totalorder %s23, 1
        %s451 = scalar_select %p450, %s23, 1
        %s452 = scalar_lea.vmem %s4, %s451
        // Predicated region
        $region45: #{tpu_custom_call.1} parent=31 // pred_check
          %p453 = pneg %p126
        $region46: #{tpu_custom_call.1} parent=31 // pred_check_branch
          %455 = sbr.rel (%p453) target = $region48
        $region47: #{tpu_custom_call.1} parent=31 // pred_region
          _
        $region48: #{tpu_custom_call.1} parent=31 // pred_fallthru
          _
        // Predicated region
        $region49: #{tpu_custom_call.1} parent=31 // pred_check
          %p456 = pneg %p152
        $region50: #{tpu_custom_call.1} parent=31 // pred_check_branch
          %458 = sbr.rel (%p456) target = $region52
        $region51: #{tpu_custom_call.1} parent=31 // pred_region
          _
        $region52: #{tpu_custom_call.1} parent=31 // pred_fallthru
          _
      $region32: #{tpu_custom_call.1} parent=5 // pred_fallthru
        _
      %p459 = scmp.le.s32.totalorder 2, %s14
      // Predicated region
      $region53: #{tpu_custom_call.1} parent=5 // pred_check
        %p460 = pneg %p459
      $region54: #{tpu_custom_call.1} parent=5 // pred_check_branch
        %462 = sbr.rel (%p460) target = $region56
      $region55: #{tpu_custom_call.1} parent=5 // pred_region
        %s463 = ssub.s32 %s14, 2
        // Predicated region
        $region57: #{tpu_custom_call.1} parent=55 // pred_check
          %p464 = pneg %p132
        $region58: #{tpu_custom_call.1} parent=55 // pred_check_branch
          %466 = sbr.rel (%p464) target = $region60
        $region59: #{tpu_custom_call.1} parent=55 // pred_region
          %p467 = scmp.lt.s32.totalorder %s25, 1
          %s468 = scalar_select %p467, %s25, 1
          %s469 = scalar_lea.vmem %s3, %s468
        $region60: #{tpu_custom_call.1} parent=55 // pred_fallthru
          _
        // Predicated region
        $region61: #{tpu_custom_call.1} parent=55 // pred_check
          %p470 = pneg %p158
        $region62: #{tpu_custom_call.1} parent=55 // pred_check_branch
          %472 = sbr.rel (%p470) target = $region64
        $region63: #{tpu_custom_call.1} parent=55 // pred_region
          %p473 = scmp.lt.s32.totalorder %s25, 1
          %s474 = scalar_select %p473, %s25, 1
          %s475 = scalar_lea.vmem %s4, %s474
        $region64: #{tpu_custom_call.1} parent=55 // pred_fallthru
          _
      $region56: #{tpu_custom_call.1} parent=5 // pred_fallthru
        _
    $region6: #{tpu_custom_call.1} parent=1 // loop_footer
      %s18 = sadd.s32 1, %s14
    $region7: #{tpu_custom_call.1} parent=1 // loop_footer_branch
      %13 = sbr.rel target = $region3
    $region8: #{tpu_custom_call.1} parent=1 // loop_exit
      _
    %476 = vsyncpa [#allocation4], 1
    %s477 = scalar_lea.sflag [#allocation4], 1
    %478 = vsyncpa %s477, 1

</llo_original>
